<compile_context>
chip_gen: v7x
topology: tpu7x:2x2x1
jax: 0.10.0
libtpu: 0.0.40
codegen_flags: <defaults>
</compile_context>

<pallas_src>
import jax
import jax.numpy as jnp
from jax.experimental import pallas as pl
from jax.experimental.pallas import tpu as pltpu


_MAX_TB = 16  # cap on statically-unrolled batch rows per grid step


def _make_kernel(tb):
    def kernel(x_ref, w_ref, b_ref, o_ref):
        # x_ref: (TB, C, TL)   w_ref: (C, C) f32, residual identity folded in
        # b_ref: (C, 1)  f32   o_ref: (TB, C, TL)
        w = w_ref[...]          # hoisted: loaded once per grid step
        b = b_ref[...]
        for i in range(tb):     # tb is a small static constant -> unrolled
            # Pointwise conv + residual in one MXU matmul (W' = W + I),
            # f32 accumulation regardless of the I/O dtype.
            y = jnp.dot(w, x_ref[i], preferred_element_type=jnp.float32)
            o_ref[i] = (y + b).astype(o_ref.dtype)
    return kernel


def _vmem_config():
    """(tile budget bytes, vmem_limit_bytes) chosen per TPU generation."""
    kind = ""
    try:
        kind = jax.devices()[0].device_kind.lower()
    except Exception:
        pass
    if "v7" in kind or "7x" in kind:
        # v7x: 64 MiB physical / 32 MiB scoped per TensorCore.
        return 24 << 20, 32 << 20
    if "v5" in kind or "v6" in kind:
        # v5e/v6e: 128 MiB physical VMEM; raise the scoped limit explicitly
        # and keep headroom below it for Mosaic internal scratch.
        return 48 << 20, 64 << 20
    # Unknown / fallback: conservative.
    return 16 << 20, 32 << 20


def _choose_tiles(B, C, L, x_itemsize, out_itemsize, vmem_budget_bytes,
                  min_steps=4):
    """Pick (TB, TL): batch rows and lane (length) extent per grid step."""
    # Pallas double-buffers every BlockSpec operand, including the resident
    # W'/bias (constant index maps), so count two copies of everything.
    # TODO(synk): on v7x, pipeline_mode=pl.Buffered(1) on W'/bias would free
    # one copy; skipped here for portability across jax/Mosaic versions.
    fixed = 2 * (C * C + C) * 4                        # W' + bias, f32
    per_elem = 2 * C * (x_itemsize + out_itemsize)     # bytes per TB*TL unit
    avail = max(0, vmem_budget_bytes - fixed)
    max_prod = max(1, avail // per_elem)               # TB * TL upper bound

    # Lane tile: full extent L whenever it fits, otherwise a multiple of 128.
    if L <= 128 or max_prod >= L:
        TL = L
    else:
        TL = max(128, (max_prod // 128) * 128)
    TB = int(max(1, min(B, _MAX_TB, max_prod // max(TL, 1))))

    # Guarantee enough grid steps for DMA/compute overlap and for both v7x
    # TensorCores — but only when the problem is big enough to matter.
    total_bytes = B * C * L * (x_itemsize + out_itemsize)
    if total_bytes >= (2 << 20):
        def steps(tb, tl):
            return pl.cdiv(B, tb) * pl.cdiv(L, tl)
        while steps(TB, TL) < min_steps and TB > 1:
            TB = max(1, TB // 2)
        while steps(TB, TL) < min_steps and TL > 128:
            new_tl = max(128, ((TL // 2) // 128) * 128)
            if new_tl == TL:
                break
            TL = new_tl
    return TB, TL


def residual_pointwise_conv(x_ncl, weight, bias):
    """Residual(fn)(x) with fn = Conv1d(C, C, kernel_size=1).

    x_ncl:  (B, C, L)  (PyTorch NCL convention; f32 or bf16)
    weight: (C_out, C_in, 1)  (PyTorch Conv1d weight), C_out == C_in
    bias:   (C_out,)
    returns (B, C, L) in x's dtype
    """
    B, C, L = x_ncl.shape
    assert weight.shape[0] == weight.shape[1] == C and weight.shape[2] == 1

    # Fold the residual into the weight:  (W + I) @ x == W @ x + x.
    w_res = weight[:, :, 0].astype(jnp.float32) + jnp.eye(C, dtype=jnp.float32)
    b_col = bias.astype(jnp.float32).reshape(C, 1)

    out_dtype = x_ncl.dtype
    x_item = jnp.dtype(x_ncl.dtype).itemsize
    out_item = jnp.dtype(out_dtype).itemsize

    budget, vmem_limit = _vmem_config()
    TB, TL = _choose_tiles(B, C, L, x_item, out_item, budget)
    grid = (pl.cdiv(B, TB), pl.cdiv(L, TL))

    return pl.pallas_call(
        _make_kernel(TB),
        out_shape=jax.ShapeDtypeStruct((B, C, L), out_dtype),
        grid=grid,
        in_specs=[
            pl.BlockSpec((TB, C, TL), lambda bi, li: (bi, 0, li)),  # x tiles
            pl.BlockSpec((C, C), lambda bi, li: (0, 0)),            # W' resident
            pl.BlockSpec((C, 1), lambda bi, li: (0, 0)),            # bias resident
        ],
        out_specs=pl.BlockSpec((TB, C, TL), lambda bi, li: (bi, 0, li)),
        compiler_params=pltpu.CompilerParams(
            dimension_semantics=("parallel", "parallel"),
            vmem_limit_bytes=vmem_limit),
        cost_estimate=pl.CostEstimate(
            flops=2 * B * L * C * C,
            bytes_accessed=B * C * L * (x_item + out_item) + C * C * 4 + C * 4,
            transcendentals=0),
    )(x_ncl, w_res, b_col)


if __name__ == "__main__":
    key = jax.random.PRNGKey(0)
    B, C, L = 2, 8, 16  # small shapes consistent with a 1-D diffusion block

    kx, kw, kb = jax.random.split(key, 3)
    x = jax.random.normal(kx, (B, C, L), dtype=jnp.float32)
    # deterministic parameter init for the inner fn (Conv1d(C, C, 1))
    weight = jax.random.normal(kw, (C, C, 1), dtype=jnp.float32) * 0.1
    bias = jax.random.normal(kb, (C,), dtype=jnp.float32) * 0.1

    out = jax.block_until_ready(residual_pointwise_conv(x, weight, bias))

    # pure-JAX reference:  fn(x) + x  with fn = pointwise conv
    fn_x = jnp.einsum("oc,bcl->bol", weight[:, :, 0], x) + bias[None, :, None]
    ref = fn_x + x
    assert out.shape == (B, C, L)
    assert jnp.allclose(out, ref, atol=1e-5, rtol=1e-5), "mismatch vs reference"

    print("KERNEL_OK")
</pallas_src>

<mosaic_0001>
module attributes {stable_mosaic.version = 11 : i64} {
  func.func @kernel(%arg0: i32, %arg1: i32, %arg2: memref<2x8x16xf32, #tpu.memory_space<vmem>>, %arg3: memref<8x8xf32, #tpu.memory_space<vmem>>, %arg4: memref<8x1xf32, #tpu.memory_space<vmem>>, %arg5: memref<2x8x16xf32, #tpu.memory_space<vmem>>) attributes {dimension_semantics = [#tpu.dimension_semantics<parallel>, #tpu.dimension_semantics<parallel>], iteration_bounds = array<i64: 1, 1>, scalar_prefetch = 0 : i64, scratch_operands = 0 : i64, tpu.core_type = #tpu.core_type<tc>, window_params = [{transform_indices = @transform_0, window_bounds = array<i64: 2, 8, 16>}, {pipeline_mode = #tpu.pipeline_mode<synchronous>, transform_indices = @transform_1, window_bounds = array<i64: 8, 8>}, {pipeline_mode = #tpu.pipeline_mode<synchronous>, transform_indices = @transform_2, window_bounds = array<i64: 8, 1>}, {transform_indices = @transform_3, window_bounds = array<i64: 2, 8, 16>}]} {
    %c0 = arith.constant 0 : index
    %c0_0 = arith.constant 0 : index
    %0 = vector.load %arg3[%c0, %c0_0] : memref<8x8xf32, #tpu.memory_space<vmem>>, vector<8x8xf32>
    %c0_1 = arith.constant 0 : index
    %c0_2 = arith.constant 0 : index
    %1 = vector.load %arg4[%c0_1, %c0_2] : memref<8x1xf32, #tpu.memory_space<vmem>>, vector<8x1xf32>
    %c0_3 = arith.constant 0 : index
    %c0_4 = arith.constant 0 : index
    %c0_5 = arith.constant 0 : index
    %2 = vector.load %arg2[%c0_3, %c0_4, %c0_5] : memref<2x8x16xf32, #tpu.memory_space<vmem>>, vector<1x8x16xf32>
    %3 = vector.shape_cast %2 : vector<1x8x16xf32> to vector<8x16xf32>
    %cst = arith.constant dense<0.000000e+00> : vector<8x16xf32>
    %4 = tpu.matmul %0, %3, %cst {dimension_numbers = #tpu.dot_dimension_numbers<[1], [0], [0], [1], [0, 0, 1, 1], [], []>} : vector<8x8xf32>, vector<8x16xf32>, vector<8x16xf32> -> vector<8x16xf32>
    %5 = vector.broadcast %1 : vector<8x1xf32> to vector<8x16xf32>
    %6 = arith.addf %4, %5 : vector<8x16xf32>
    %c0_6 = arith.constant 0 : index
    %c0_7 = arith.constant 0 : index
    %c0_8 = arith.constant 0 : index
    %7 = vector.load %arg5[%c0_6, %c0_7, %c0_8] : memref<2x8x16xf32, #tpu.memory_space<vmem>>, vector<1x8x16xf32>
    %8 = vector.shape_cast %7 : vector<1x8x16xf32> to vector<8x16xf32>
    %9 = vector.shape_cast %6 : vector<8x16xf32> to vector<1x8x16xf32>
    tpu.vector_store %arg5[%c0_6, %c0_7, %c0_8], %9 {strides = array<i32>} : memref<2x8x16xf32, #tpu.memory_space<vmem>>, vector<1x8x16xf32>,
    %c1 = arith.constant 1 : index
    %c0_9 = arith.constant 0 : index
    %c0_10 = arith.constant 0 : index
    %10 = vector.load %arg2[%c1, %c0_9, %c0_10] : memref<2x8x16xf32, #tpu.memory_space<vmem>>, vector<1x8x16xf32>
    %11 = vector.shape_cast %10 : vector<1x8x16xf32> to vector<8x16xf32>
    %cst_11 = arith.constant dense<0.000000e+00> : vector<8x16xf32>
    %12 = tpu.matmul %0, %11, %cst_11 {dimension_numbers = #tpu.dot_dimension_numbers<[1], [0], [0], [1], [0, 0, 1, 1], [], []>} : vector<8x8xf32>, vector<8x16xf32>, vector<8x16xf32> -> vector<8x16xf32>
    %13 = vector.broadcast %1 : vector<8x1xf32> to vector<8x16xf32>
    %14 = arith.addf %12, %13 : vector<8x16xf32>
    %c1_12 = arith.constant 1 : index
    %c0_13 = arith.constant 0 : index
    %c0_14 = arith.constant 0 : index
    %15 = vector.load %arg5[%c1_12, %c0_13, %c0_14] : memref<2x8x16xf32, #tpu.memory_space<vmem>>, vector<1x8x16xf32>
    %16 = vector.shape_cast %15 : vector<1x8x16xf32> to vector<8x16xf32>
    %17 = vector.shape_cast %14 : vector<8x16xf32> to vector<1x8x16xf32>
    tpu.vector_store %arg5[%c1_12, %c0_13, %c0_14], %17 {strides = array<i32>} : memref<2x8x16xf32, #tpu.memory_space<vmem>>, vector<1x8x16xf32>,
    return
  }
  func.func @transform_0(%arg0: i32, %arg1: i32) -> (i32, i32, i32) {
    %c0_i32 = arith.constant 0 : i32
    %c0_i32_0 = arith.constant 0 : i32
    return %arg0, %c0_i32, %arg1 : i32, i32, i32
  }
  func.func @transform_1(%arg0: i32, %arg1: i32) -> (i32, i32) {
    %c0_i32 = arith.constant 0 : i32
    %c0_i32_0 = arith.constant 0 : i32
    %c0_i32_1 = arith.constant 0 : i32
    return %c0_i32, %c0_i32_0 : i32, i32
  }
  func.func @transform_2(%arg0: i32, %arg1: i32) -> (i32, i32) {
    %c0_i32 = arith.constant 0 : i32
    %c0_i32_0 = arith.constant 0 : i32
    %c0_i32_1 = arith.constant 0 : i32
    return %c0_i32, %c0_i32_0 : i32, i32
  }
  func.func @transform_3(%arg0: i32, %arg1: i32) -> (i32, i32, i32) {
    %c0_i32 = arith.constant 0 : i32
    %c0_i32_0 = arith.constant 0 : i32
    return %arg0, %c0_i32, %arg1 : i32, i32, i32
  }
}

</mosaic_0001>

<llo_original>
// kernel: tpu_custom_call.1
$region0: #{tpu_custom_call.1}
  #allocation0 [shape = 'u32[]', space=smem, size = 0x4, offset = 0x4, fixed_abs, tag = 'smem constant byte address 0x4 - core index']
  #allocation1 [shape = 'u32[144,128]{1,0:T(1,128)}', space=vmem, size = 0x12000, scoped, tag = 'internal scratch']
  %s0 = inlined_call_operand.hbm [shape: f32[2,8,16], index: 0, kind: input, shape index: {}]
  %s1 = inlined_call_operand.vmem [shape: f32[8,8], index: 1, kind: input, shape index: {}]
  %s2 = inlined_call_operand.vmem [shape: f32[8,1], index: 2, kind: input, shape index: {}]
  %s3 = inlined_call_operand.hbm [shape: f32[2,8,16], index: 3, kind: output, shape index: {}]
  %s4 = sld [smem:[#allocation0]]
  $region26: #{tpu_custom_call.1} parent=0
    _
  %s6 = ssub.s32 1, %s4
  %s7 = scalar_select 0, %s6, %s4
  $region1: #{tpu_custom_call.1} parent=0
    #allocation2 [shape = 'u8[8192]{0}', space=vmem, size = 0x2000, scoped, tag = 'input window, operand 0, single buffered']
    #allocation3 [shape = 's32[1]{0}', space=sflag, size = 0x4, scoped, tag = 'scoped memory for tpu_custom_call.1']
    #allocation4 [shape = 's32[1]{0}', space=sflag, size = 0x4, scoped, tag = 'scoped memory for tpu_custom_call.1']
    #allocation5 [shape = 'u8[8192]{0}', space=vmem, size = 0x2000, scoped, tag = 'output window, operand 0, single buffered']
    %8 = vsyncpa [#allocation3], 0
    %9 = vsyncpa [#allocation4], 0
    // Predicated region
    $region2: #{tpu_custom_call.1} parent=1 // pred_check
      _
    $region3: #{tpu_custom_call.1} parent=1 // pred_check_branch
      %11 = sbr.rel (0) target = $region5
    $region4: #{tpu_custom_call.1} parent=1 // pred_region
      %s13 = ssub.s32 256, 256
      %14 = vsyncadd [#allocation3], %s13
      %s15 = sshll.u32 [#allocation2], 4
      %s16 = int_to_ptr.vmem [resolvable:$true] %s15
      %21 = dma.hbm_to_vmem [thread:$0]  %s0, 256, %s16, [#allocation3], 128, 128, 8
    $region5: #{tpu_custom_call.1} parent=1 // pred_fallthru
      _
    // Predicated region
    $region6: #{tpu_custom_call.1} parent=1 // pred_check
      _
    $region7: #{tpu_custom_call.1} parent=1 // pred_check_branch
      %23 = sbr.rel (0) target = $region9
    $region8: #{tpu_custom_call.1} parent=1 // pred_region
      _
    $region9: #{tpu_custom_call.1} parent=1 // pred_fallthru
      _
    // Predicated region
    $region10: #{tpu_custom_call.1} parent=1 // pred_check
      _
    $region11: #{tpu_custom_call.1} parent=1 // pred_check_branch
      %25 = sbr.rel (0) target = $region13
    $region12: #{tpu_custom_call.1} parent=1 // pred_region
      _
    $region13: #{tpu_custom_call.1} parent=1 // pred_fallthru
      _
    // Predicated region
    $region14: #{tpu_custom_call.1} parent=1 // pred_check
      _
    $region15: #{tpu_custom_call.1} parent=1 // pred_check_branch
      %27 = sbr.rel (0) target = $region17
    $region16: #{tpu_custom_call.1} parent=1 // pred_region
      %28 = dma.done [#allocation3], 256
    $region17: #{tpu_custom_call.1} parent=1 // pred_fallthru
      _
    %v29 = vld [vmem:[%s1] sm:$0xff]
    %v30 = vld [vmem:[%s2] sm:$0xff]
    %v31 = vld [vmem:[#allocation2] sm:$0xff]
    %33 = vset.pattern.permute.xlu0 0
    %34 = vperm.xlu0 %33, %v30
    %v35 = vpop.permute.xlu0 %34
    %vm37 = vcmask 64512
    %v39 = vsel %vm37, %v29, 0
    %41 = vmatprep.subr.mxu0 0.0
    %42 = vmatpush1.msra.mxu0 %v31
    %43 = vmatprep.subr.mxu0 0.0
    %44 = vmatpush1.msra.mxu0 0.0
    %45 = vmatprep.subr.mxu0 0.0
    %46 = vmatpush1.msra.mxu0 0.0
    %47 = vmatprep.subr.mxu0 0.0
    %48 = vmatpush1.msra.mxu0 0.0
    %49 = vmatprep.subr.mxu0 0.0
    %50 = vmatpush1.msra.mxu0 0.0
    %51 = vmatprep.subr.mxu0 0.0
    %52 = vmatpush1.msra.mxu0 0.0
    %53 = vmatprep.subr.mxu0 0.0
    %54 = vmatpush1.msra.mxu0 0.0
    %55 = vmatprep.subr.mxu0 0.0
    %56 = vmatpush1.msra.mxu0 0.0
    %57 = vmatprep.subr.mxu0 0.0
    %58 = vmatpush1.msra.mxu0 0.0
    %59 = vmatprep.subr.mxu0 0.0
    %60 = vmatpush1.msra.mxu0 0.0
    %61 = vmatprep.subr.mxu0 0.0
    %62 = vmatpush1.msra.mxu0 0.0
    %63 = vmatprep.subr.mxu0 0.0
    %64 = vmatpush1.msra.mxu0 0.0
    %65 = vmatprep.subr.mxu0 0.0
    %66 = vmatpush1.msra.mxu0 0.0
    %67 = vmatprep.subr.mxu0 0.0
    %68 = vmatpush1.msra.mxu0 0.0
    %69 = vmatprep.subr.mxu0 0.0
    %70 = vmatpush1.msra.mxu0 0.0
    %71 = vmatprep.subr.mxu0 0.0
    %72 = vmatpush1.msra.mxu0 0.0
    %73 = vmatprep.subr.mxu0 0.0
    %74 = vmatpush1.msra.mxu0 0.0
    %75 = vmatprep.subr.mxu0 0.0
    %76 = vmatpush1.msra.mxu0 0.0
    %77 = vmatprep.subr.mxu0 0.0
    %78 = vmatpush1.msra.mxu0 0.0
    %79 = vmatprep.subr.mxu0 0.0
    %80 = vmatpush1.msra.mxu0 0.0
    %81 = vmatprep.subr.mxu0 0.0
    %82 = vmatpush1.msra.mxu0 0.0
    %83 = vmatprep.subr.mxu0 0.0
    %84 = vmatpush1.msra.mxu0 0.0
    %85 = vmatprep.subr.mxu0 0.0
    %86 = vmatpush1.msra.mxu0 0.0
    %87 = vmatprep.subr.mxu0 0.0
    %88 = vmatpush1.msra.mxu0 0.0
    %89 = vmatprep.subr.mxu0 0.0
    %90 = vmatpush1.msra.mxu0 0.0
    %91 = vmatprep.subr.mxu0 0.0
    %92 = vmatpush1.msra.mxu0 0.0
    %93 = vmatprep.subr.mxu0 0.0
    %94 = vmatpush1.msra.mxu0 0.0
    %95 = vmatprep.subr.mxu0 0.0
    %96 = vmatpush1.msra.mxu0 0.0
    %97 = vmatprep.subr.mxu0 0.0
    %98 = vmatpush1.msra.mxu0 0.0
    %99 = vmatprep.subr.mxu0 0.0
    %100 = vmatpush1.msra.mxu0 0.0
    %101 = vmatprep.subr.mxu0 0.0
    %102 = vmatpush1.msra.mxu0 0.0
    %103 = vmatprep.subr.mxu0 0.0
    %104 = vmatpush1.msra.mxu0 0.0
    %105 = vmatprep.mubr.f32.mxu0 0.0
    %106 = vmatmul.mubr.f32.gmra.mrb[0].mxu0 %v39
    %v107 = vpop.f32.mrb[0].mxu0
    %v108 = vadd.f32 %v35, %v107
    %v109 = vpop.f32.mrb[0].mxu0
    %110 = vdwg.mxu0
    %vm111 = vcmask 130048
    %112 = vst.msk [vmem:[#allocation5] sm:$0xff] %vm111, %v108
    %s113 = scalar_lea.vmem [#allocation2], 8
    %v114 = vld [vmem:[%s113] sm:$0xff]
    %115 = vmatprep.subr.mxu0 0.0
    %116 = vmatpush1.msra.mxu0 %v114
    %117 = vmatprep.subr.mxu0 0.0
    %118 = vmatpush1.msra.mxu0 0.0
    %119 = vmatprep.subr.mxu0 0.0
    %120 = vmatpush1.msra.mxu0 0.0
    %121 = vmatprep.subr.mxu0 0.0
    %122 = vmatpush1.msra.mxu0 0.0
    %123 = vmatprep.subr.mxu0 0.0
    %124 = vmatpush1.msra.mxu0 0.0
    %125 = vmatprep.subr.mxu0 0.0
    %126 = vmatpush1.msra.mxu0 0.0
    %127 = vmatprep.subr.mxu0 0.0
    %128 = vmatpush1.msra.mxu0 0.0
    %129 = vmatprep.subr.mxu0 0.0
    %130 = vmatpush1.msra.mxu0 0.0
    %131 = vmatprep.subr.mxu0 0.0
    %132 = vmatpush1.msra.mxu0 0.0
    %133 = vmatprep.subr.mxu0 0.0
    %134 = vmatpush1.msra.mxu0 0.0
    %135 = vmatprep.subr.mxu0 0.0
    %136 = vmatpush1.msra.mxu0 0.0
    %137 = vmatprep.subr.mxu0 0.0
    %138 = vmatpush1.msra.mxu0 0.0
    %139 = vmatprep.subr.mxu0 0.0
    %140 = vmatpush1.msra.mxu0 0.0
    %141 = vmatprep.subr.mxu0 0.0
    %142 = vmatpush1.msra.mxu0 0.0
    %143 = vmatprep.subr.mxu0 0.0
    %144 = vmatpush1.msra.mxu0 0.0
    %145 = vmatprep.subr.mxu0 0.0
    %146 = vmatpush1.msra.mxu0 0.0
    %147 = vmatprep.subr.mxu0 0.0
    %148 = vmatpush1.msra.mxu0 0.0
    %149 = vmatprep.subr.mxu0 0.0
    %150 = vmatpush1.msra.mxu0 0.0
    %151 = vmatprep.subr.mxu0 0.0
    %152 = vmatpush1.msra.mxu0 0.0
    %153 = vmatprep.subr.mxu0 0.0
    %154 = vmatpush1.msra.mxu0 0.0
    %155 = vmatprep.subr.mxu0 0.0
    %156 = vmatpush1.msra.mxu0 0.0
    %157 = vmatprep.subr.mxu0 0.0
    %158 = vmatpush1.msra.mxu0 0.0
    %159 = vmatprep.subr.mxu0 0.0
    %160 = vmatpush1.msra.mxu0 0.0
    %161 = vmatprep.subr.mxu0 0.0
    %162 = vmatpush1.msra.mxu0 0.0
    %163 = vmatprep.subr.mxu0 0.0
    %164 = vmatpush1.msra.mxu0 0.0
    %165 = vmatprep.subr.mxu0 0.0
    %166 = vmatpush1.msra.mxu0 0.0
    %167 = vmatprep.subr.mxu0 0.0
    %168 = vmatpush1.msra.mxu0 0.0
    %169 = vmatprep.subr.mxu0 0.0
    %170 = vmatpush1.msra.mxu0 0.0
    %171 = vmatprep.subr.mxu0 0.0
    %172 = vmatpush1.msra.mxu0 0.0
    %173 = vmatprep.subr.mxu0 0.0
    %174 = vmatpush1.msra.mxu0 0.0
    %175 = vmatprep.subr.mxu0 0.0
    %176 = vmatpush1.msra.mxu0 0.0
    %177 = vmatprep.subr.mxu0 0.0
    %178 = vmatpush1.msra.mxu0 0.0
    %179 = vmatprep.mubr.f32.mxu0 0.0
    %180 = vmatmul.mubr.f32.gmra.mrb[0].mxu0 %v39
    %v181 = vpop.f32.mrb[0].mxu0
    %v182 = vadd.f32 %v35, %v181
    %v183 = vpop.f32.mrb[0].mxu0
    %184 = vdwg.mxu0
    %s185 = scalar_lea.vmem [#allocation5], 8
    %186 = vst.msk [vmem:[%s185] sm:$0xff] %vm111, %v182
    // Predicated region
    $region18: #{tpu_custom_call.1} parent=1 // pred_check
      _
    $region19: #{tpu_custom_call.1} parent=1 // pred_check_branch
      %188 = sbr.rel (0) target = $region21
    $region20: #{tpu_custom_call.1} parent=1 // pred_region
      %s190 = ssub.s32 256, 256
      %191 = vsyncadd [#allocation4], %s190
      %s192 = sshll.u32 [#allocation5], 4
      %s193 = int_to_ptr.vmem [resolvable:$true] %s192
      %198 = dma.vmem_to_hbm [thread:$0]  %s193, 256, %s3, [#allocation4], 128, 128, 8
    $region21: #{tpu_custom_call.1} parent=1 // pred_fallthru
      _
    // Predicated region
    $region22: #{tpu_custom_call.1} parent=1 // pred_check
      _
    $region23: #{tpu_custom_call.1} parent=1 // pred_check_branch
      %200 = sbr.rel (0) target = $region25
    $region24: #{tpu_custom_call.1} parent=1 // pred_region
      %201 = dma.done [#allocation4], 256
    $region25: #{tpu_custom_call.1} parent=1 // pred_fallthru
      _
    %202 = vsyncpa [#allocation3], 1
    %203 = vsyncpa [#allocation4], 1

</llo_original>
